<compile_context>
chip_gen: v6e
topology: v6e:2x2x1
jax: 0.10.0
libtpu: 0.0.40
codegen_flags: <defaults>
</compile_context>

<pallas_src>
import functools

import jax
import jax.numpy as jnp
from jax.experimental import pallas as pl
from jax.experimental.pallas import tpu as pltpu

HUBERT_DIM = 768   # HuBERT base hidden size
EMBED_DIM = 512    # projection output size (EMBED_DIM in the reference)

# Tile caps: feature tile (8, 256, 768) f32 ~= 6 MiB, x2 buffers = 12 MiB,
# plus resident W (1.5 MiB), bias, accumulator, output -> well under the
# 32 MiB default scoped VMEM on all generations (v7x included).
_MAX_B_TILE = 8
_MAX_T_TILE = 256


def _pick_tile(n, max_tile, mult):
    """Largest t <= max_tile with t % mult == 0 and n % t == 0, else n."""
    t = min(n, max_tile)
    t -= t % mult
    while t >= mult:
        if n % t == 0:
            return t
        t -= mult
    return n  # fall back to full extent (always a legal block dim)


def audio_head_kernel(feat_ref, w_ref, b_ref, out_ref, acc_ref, *, inv_t):
    """Streaming mean-pool over time, then project + L2-normalize.

    feat_ref: (B_tile, T_tile, D) VMEM   current feature tile
    w_ref:    (D, E)              VMEM   Linear weight (pre-transposed), resident
    b_ref:    (1, E)              VMEM   Linear bias, resident
    out_ref:  (B_tile, E)         VMEM   output tile (same block across T axis)
    acc_ref:  (B_tile, D)         VMEM   f32 running time-sum scratch
    """
    t = pl.program_id(1)

    @pl.when(t == 0)
    def _init():
        acc_ref[...] = jnp.zeros_like(acc_ref)

    # Accumulate raw time-sum; the 1/T scale is folded into the finalize step.
    acc_ref[...] += jnp.sum(feat_ref[...], axis=1)

    @pl.when(t == pl.num_programs(1) - 1)
    def _finalize():
        pooled = acc_ref[...] * inv_t                              # (B_tile, D)
        proj = jnp.dot(pooled, w_ref[...],
                       preferred_element_type=jnp.float32)         # MXU
        proj = proj + b_ref[...]                                   # (1, E) bcast
        # F.normalize(dim=-1): x / max(||x||_2, eps), eps = 1e-12.
        # rsqrt(max(sq, eps^2)) == 1 / max(sqrt(sq), eps)  (monotone sqrt),
        # and rsqrt runs on the EUP instead of sqrt+divide on the VALU.
        sq = jnp.sum(proj * proj, axis=-1, keepdims=True)          # (B_tile, 1)
        inv = jax.lax.rsqrt(jnp.maximum(sq, 1e-24))
        out_ref[...] = proj * inv


def audio_encoder_head(features, w, b):
    """features: (B, T, D) f32; w: (D, E) f32; b: (E,) f32 -> (B, E) f32."""
    B, T, D = features.shape
    E = w.shape[1]
    b2 = b.reshape(1, E)

    b_tile = _pick_tile(B, _MAX_B_TILE, 1)      # leading dim: any divisor
    t_tile = _pick_tile(T, _MAX_T_TILE, 8)      # sublane dim: multiple of 8
    grid = (B // b_tile, pl.cdiv(T, t_tile))

    kernel = functools.partial(audio_head_kernel, inv_t=1.0 / float(T))

    cost = pl.CostEstimate(
        flops=2 * B * D * E + B * T * D + 3 * B * E,
        transcendentals=B,
        bytes_accessed=B * T * D * 4 + D * E * 4 + E * 4 + B * E * 4,
    )

    return pl.pallas_call(
        kernel,
        out_shape=jax.ShapeDtypeStruct((B, E), jnp.float32),
        grid_spec=pltpu.PrefetchScalarGridSpec(
            num_scalar_prefetch=0,
            grid=grid,
            in_specs=[
                # Streamed feature tiles (double-buffered by the pipeline).
                pl.BlockSpec((b_tile, t_tile, D), lambda bi, ti: (bi, ti, 0)),
                # Weight / bias resident across the (arbitrary) T axis.
                pl.BlockSpec((D, E), lambda bi, ti: (0, 0)),
                pl.BlockSpec((1, E), lambda bi, ti: (0, 0)),
            ],
            out_specs=pl.BlockSpec((b_tile, E), lambda bi, ti: (bi, 0)),
            scratch_shapes=[pltpu.VMEM((b_tile, D), jnp.float32)],
        ),
        compiler_params=pltpu.CompilerParams(
            dimension_semantics=("parallel", "arbitrary"),
        ),
        cost_estimate=cost,
    )(features, w, b2)


def reference(features, w, b):
    pooled = jnp.mean(features, axis=1)
    proj = pooled @ w + b
    norm = jnp.sqrt(jnp.sum(proj * proj, axis=-1, keepdims=True))
    return proj / jnp.maximum(norm, 1e-12)


if __name__ == "__main__":
    key = jax.random.PRNGKey(0)
    k_feat, k_w, k_b = jax.random.split(key, 3)

    # Small shapes; T spans multiple time tiles of 8 to exercise accumulation.
    B, T = 2, 16
    # Stand-in for HuBERT last-layer features (see TODO above).
    features = jax.random.normal(k_feat, (B, T, HUBERT_DIM), dtype=jnp.float32)

    # Deterministic nn.Linear(768, 512)-style init: U(-1/sqrt(fan_in), +...)
    bound = 1.0 / (HUBERT_DIM ** 0.5)
    w = jax.random.uniform(k_w, (HUBERT_DIM, EMBED_DIM),
                           minval=-bound, maxval=bound, dtype=jnp.float32)
    b = jax.random.uniform(k_b, (EMBED_DIM,),
                           minval=-bound, maxval=bound, dtype=jnp.float32)

    out = audio_encoder_head(features, w, b)
    out = jax.block_until_ready(out)

    ref = reference(features, w, b)
    assert out.shape == (B, EMBED_DIM)
    assert jnp.allclose(out, ref, atol=1e-5, rtol=1e-5)
    # L2 norm of each row should be ~1
    assert jnp.allclose(jnp.linalg.norm(out, axis=-1), 1.0, atol=1e-5)

    print("KERNEL_OK")
</pallas_src>

<mosaic_0001>
module attributes {stable_mosaic.version = 11 : i64} {
  func.func @audio_head_kernel(%arg0: i32, %arg1: i32, %arg2: memref<2x16x768xf32, #tpu.memory_space<vmem>>, %arg3: memref<768x512xf32, #tpu.memory_space<vmem>>, %arg4: memref<1x512xf32, #tpu.memory_space<vmem>>, %arg5: memref<2x512xf32, #tpu.memory_space<vmem>>, %arg6: memref<2x768xf32, #tpu.memory_space<vmem>>) attributes {dimension_semantics = [#tpu.dimension_semantics<parallel>, #tpu.dimension_semantics<arbitrary>], iteration_bounds = array<i64: 1, 1>, scalar_prefetch = 0 : i64, scratch_operands = 1 : i64, tpu.core_type = #tpu.core_type<tc>, window_params = [{transform_indices = @transform_0, window_bounds = array<i64: 2, 16, 768>}, {pipeline_mode = #tpu.pipeline_mode<synchronous>, transform_indices = @transform_1, window_bounds = array<i64: 768, 512>}, {pipeline_mode = #tpu.pipeline_mode<synchronous>, transform_indices = @transform_2, window_bounds = array<i64: 1, 512>}, {transform_indices = @transform_3, window_bounds = array<i64: 2, 512>}]} {
    %c0_i32 = arith.constant 0 : i32
    %0 = arith.cmpi eq, %arg1, %c0_i32 : i32
    %1 = arith.extui %0 : i1 to i32
    %c0_i32_0 = arith.constant 0 : i32
    %2 = arith.cmpi ne, %1, %c0_i32_0 : i32
    scf.if %2 {
      %cst_9 = arith.constant 0.000000e+00 : f32
      %11 = vector.broadcast %cst_9 : f32 to vector<2x768xf32>
      %c0_10 = arith.constant 0 : index
      %c0_11 = arith.constant 0 : index
      %12 = vector.load %arg6[%c0_10, %c0_11] : memref<2x768xf32, #tpu.memory_space<vmem>>, vector<2x768xf32>
      tpu.vector_store %arg6[%c0_10, %c0_11], %11 {strides = array<i32>} : memref<2x768xf32, #tpu.memory_space<vmem>>, vector<2x768xf32>,
    } else {
    }
    %c0 = arith.constant 0 : index
    %c0_1 = arith.constant 0 : index
    %3 = vector.load %arg6[%c0, %c0_1] : memref<2x768xf32, #tpu.memory_space<vmem>>, vector<2x768xf32>
    %c0_2 = arith.constant 0 : index
    %c0_3 = arith.constant 0 : index
    %c0_4 = arith.constant 0 : index
    %4 = vector.load %arg2[%c0_2, %c0_3, %c0_4] : memref<2x16x768xf32, #tpu.memory_space<vmem>>, vector<2x16x768xf32>
    %cst = arith.constant dense<0.000000e+00> : vector<2x768xf32>
    %5 = vector.multi_reduction <add>, %4, %cst [1] : vector<2x16x768xf32> to vector<2x768xf32>
    %6 = arith.addf %3, %5 : vector<2x768xf32>
    %c0_5 = arith.constant 0 : index
    %c0_6 = arith.constant 0 : index
    %7 = vector.load %arg6[%c0_5, %c0_6] : memref<2x768xf32, #tpu.memory_space<vmem>>, vector<2x768xf32>
    tpu.vector_store %arg6[%c0_5, %c0_6], %6 {strides = array<i32>} : memref<2x768xf32, #tpu.memory_space<vmem>>, vector<2x768xf32>,
    %c0_i32_7 = arith.constant 0 : i32
    %8 = arith.cmpi eq, %arg1, %c0_i32_7 : i32
    %9 = arith.extui %8 : i1 to i32
    %c0_i32_8 = arith.constant 0 : i32
    %10 = arith.cmpi ne, %9, %c0_i32_8 : i32
    scf.if %10 {
      %c0_9 = arith.constant 0 : index
      %c0_10 = arith.constant 0 : index
      %11 = vector.load %arg6[%c0_9, %c0_10] : memref<2x768xf32, #tpu.memory_space<vmem>>, vector<2x768xf32>
      %cst_11 = arith.constant 6.250000e-02 : f32
      %12 = vector.broadcast %cst_11 : f32 to vector<2x768xf32>
      %13 = arith.mulf %11, %12 : vector<2x768xf32>
      %c0_12 = arith.constant 0 : index
      %c0_13 = arith.constant 0 : index
      %14 = vector.load %arg3[%c0_12, %c0_13] : memref<768x512xf32, #tpu.memory_space<vmem>>, vector<768x512xf32>
      %cst_14 = arith.constant dense<0.000000e+00> : vector<2x512xf32>
      %15 = tpu.matmul %13, %14, %cst_14 {dimension_numbers = #tpu.dot_dimension_numbers<[1], [0], [0], [1], [0, 0, 1, 1], [], []>} : vector<2x768xf32>, vector<768x512xf32>, vector<2x512xf32> -> vector<2x512xf32>
      %c0_15 = arith.constant 0 : index
      %c0_16 = arith.constant 0 : index
      %16 = vector.load %arg4[%c0_15, %c0_16] : memref<1x512xf32, #tpu.memory_space<vmem>>, vector<1x512xf32>
      %17 = vector.broadcast %16 : vector<1x512xf32> to vector<2x512xf32>
      %18 = arith.addf %15, %17 : vector<2x512xf32>
      %19 = arith.mulf %18, %18 : vector<2x512xf32>
      %cst_17 = arith.constant dense<0.000000e+00> : vector<2xf32>
      %20 = vector.multi_reduction <add>, %19, %cst_17 [1] : vector<2x512xf32> to vector<2xf32>
      %21 = vector.shape_cast %20 : vector<2xf32> to vector<2x1xf32>
      %cst_18 = arith.constant 1.000000e-24 : f32
      %22 = vector.broadcast %cst_18 : f32 to vector<2x1xf32>
      %23 = arith.maximumf %21, %22 : vector<2x1xf32>
      %24 = math.rsqrt %23 : vector<2x1xf32>
      %25 = vector.broadcast %24 : vector<2x1xf32> to vector<2x512xf32>
      %26 = arith.mulf %18, %25 : vector<2x512xf32>
      %c0_19 = arith.constant 0 : index
      %c0_20 = arith.constant 0 : index
      %27 = vector.load %arg5[%c0_19, %c0_20] : memref<2x512xf32, #tpu.memory_space<vmem>>, vector<2x512xf32>
      tpu.vector_store %arg5[%c0_19, %c0_20], %26 {strides = array<i32>} : memref<2x512xf32, #tpu.memory_space<vmem>>, vector<2x512xf32>,
    } else {
    }
    return
  }
  func.func @transform_0(%arg0: i32, %arg1: i32) -> (i32, i32, i32) {
    %c0_i32 = arith.constant 0 : i32
    %c0_i32_0 = arith.constant 0 : i32
    return %arg0, %arg1, %c0_i32 : i32, i32, i32
  }
  func.func @transform_1(%arg0: i32, %arg1: i32) -> (i32, i32) {
    %c0_i32 = arith.constant 0 : i32
    %c0_i32_0 = arith.constant 0 : i32
    %c0_i32_1 = arith.constant 0 : i32
    return %c0_i32, %c0_i32_0 : i32, i32
  }
  func.func @transform_2(%arg0: i32, %arg1: i32) -> (i32, i32) {
    %c0_i32 = arith.constant 0 : i32
    %c0_i32_0 = arith.constant 0 : i32
    %c0_i32_1 = arith.constant 0 : i32
    return %c0_i32, %c0_i32_0 : i32, i32
  }
  func.func @transform_3(%arg0: i32, %arg1: i32) -> (i32, i32) {
    %c0_i32 = arith.constant 0 : i32
    %c0_i32_0 = arith.constant 0 : i32
    return %arg0, %c0_i32 : i32, i32
  }
}

</mosaic_0001>

<llo_original>
// kernel: tpu_custom_call.1
$region0: #{tpu_custom_call.1}
  #allocation0 [shape = 'u32[]', space=smem, size = 0x4, offset = 0x4, fixed_abs, tag = 'smem constant byte address 0x4 - core index']
  #allocation1 [shape = 'u32[144,128]{1,0:T(1,128)}', space=vmem, size = 0x12000, scoped, tag = 'internal scratch']
  #allocation2 [shape = 'f32[2,768]{1,0:T(2,128)}', space=vmem, size = 0x1800, scoped, tag = 'scratch operand']
  %s0 = inlined_call_operand.hbm [shape: f32[2,16,768], index: 0, kind: input, shape index: {}]
  %s1 = inlined_call_operand.hbm [shape: f32[768,512], index: 1, kind: input, shape index: {}]
  %s2 = inlined_call_operand.hbm [shape: f32[1,512], index: 2, kind: input, shape index: {}]
  %s3 = inlined_call_operand.hbm [shape: f32[2,512], index: 3, kind: output, shape index: {}]
  %s4 = sld [smem:[#allocation0]]
  $region42: #{tpu_custom_call.1} parent=0
    _
  %s6 = ssub.s32 1, %s4
  %s7 = scalar_select 0, %s6, %s4
  $region1: #{tpu_custom_call.1} parent=0
    #allocation3 [shape = 'u8[98304]{0}', space=vmem, size = 0x18000, scoped, tag = 'input window, operand 0, single buffered']
    #allocation4 [shape = 's32[1]{0}', space=sflag, size = 0x4, scoped, tag = 'scoped memory for tpu_custom_call.1']
    #allocation5 [shape = 's32[1]{0}', space=sflag, size = 0x4, scoped, tag = 'scoped memory for tpu_custom_call.1']
    #allocation6 [shape = 'u8[1572864]{0}', space=vmem, size = 0x180000, scoped, tag = 'input window, operand 1, single buffered']
    #allocation7 [shape = 's32[1]{0}', space=sflag, size = 0x4, scoped, tag = 'scoped memory for tpu_custom_call.1']
    #allocation8 [shape = 'u8[2048]{0}', space=vmem, size = 0x800, scoped, tag = 'input window, operand 2, single buffered']
    #allocation9 [shape = 'u8[4096]{0}', space=vmem, size = 0x1000, scoped, tag = 'output window, operand 0, single buffered']
    %8 = vsyncpa [#allocation4], 0
    %9 = vsyncpa [#allocation7], 0
    %10 = vsyncpa [#allocation5], 0
    // Predicated region
    $region2: #{tpu_custom_call.1} parent=1 // pred_check
      _
    $region3: #{tpu_custom_call.1} parent=1 // pred_check_branch
      %12 = sbr.rel (0) target = $region5
    $region4: #{tpu_custom_call.1} parent=1 // pred_region
      %s14 = ssub.s32 3072, 3072
      %15 = vsyncadd [#allocation4], %s14
      %s16 = sshll.u32 [#allocation3], 4
      %s17 = int_to_ptr.vmem [resolvable:$true] %s16
      %22 = dma.hbm_to_vmem [thread:$0]  %s0, 3072, %s17, [#allocation4], 768, 768, 48
    $region5: #{tpu_custom_call.1} parent=1 // pred_fallthru
      _
    // Predicated region
    $region6: #{tpu_custom_call.1} parent=1 // pred_check
      _
    $region7: #{tpu_custom_call.1} parent=1 // pred_check_branch
      %24 = sbr.rel (0) target = $region9
    $region8: #{tpu_custom_call.1} parent=1 // pred_region
      %s26 = ssub.s32 49152, 49152
      %27 = vsyncadd [#allocation7], %s26
      %s28 = sshll.u32 [#allocation6], 4
      %s29 = int_to_ptr.vmem [resolvable:$true] %s28
      %34 = dma.hbm_to_vmem [thread:$0]  %s1, 49152, %s29, [#allocation7], 512, 512, 32
    $region9: #{tpu_custom_call.1} parent=1 // pred_fallthru
      _
    // Predicated region
    $region10: #{tpu_custom_call.1} parent=1 // pred_check
      _
    $region11: #{tpu_custom_call.1} parent=1 // pred_check_branch
      %36 = sbr.rel (0) target = $region13
    $region12: #{tpu_custom_call.1} parent=1 // pred_region
      %s38 = ssub.s32 64, 64
      %39 = vsyncadd [#allocation7], %s38
      %s41 = sshll.u32 [#allocation8], 4
      %s42 = int_to_ptr.vmem [resolvable:$true] %s41
      %44 = dma.hbm_to_vmem [thread:$0]  %s2, 64, %s42, [#allocation7]
    $region13: #{tpu_custom_call.1} parent=1 // pred_fallthru
      _
    // Predicated region
    $region14: #{tpu_custom_call.1} parent=1 // pred_check
      _
    $region15: #{tpu_custom_call.1} parent=1 // pred_check_branch
      %46 = sbr.rel (0) target = $region17
    $region16: #{tpu_custom_call.1} parent=1 // pred_region
      %47 = dma.done [#allocation4], 3072
    $region17: #{tpu_custom_call.1} parent=1 // pred_fallthru
      _
    // Predicated region
    $region18: #{tpu_custom_call.1} parent=1 // pred_check
      _
    $region19: #{tpu_custom_call.1} parent=1 // pred_check_branch
      %49 = sbr.rel (0) target = $region21
    $region20: #{tpu_custom_call.1} parent=1 // pred_region
      %50 = dma.done [#allocation7], 49152
    $region21: #{tpu_custom_call.1} parent=1 // pred_fallthru
      _
    // Predicated region
    $region22: #{tpu_custom_call.1} parent=1 // pred_check
      _
    $region23: #{tpu_custom_call.1} parent=1 // pred_check_branch
      %52 = sbr.rel (0) target = $region25
    $region24: #{tpu_custom_call.1} parent=1 // pred_region
      %53 = dma.done [#allocation7], 64
    $region25: #{tpu_custom_call.1} parent=1 // pred_fallthru
      _
    %p54 = scmp.eq.s32.totalorder 0, 0
    // Predicated region
    $region26: #{tpu_custom_call.1} parent=1 // pred_check
      %p55 = pneg %p54
    $region27: #{tpu_custom_call.1} parent=1 // pred_check_branch
      %57 = sbr.rel (%p55) target = $region29
    $region28: #{tpu_custom_call.1} parent=1 // pred_region
      %58 = vst [vmem:[#allocation2] sm:$0xff] 0.0
      %59 = vst [vmem:[#allocation2 + $0x8] sm:$0xf] 0.0
    $region29: #{tpu_custom_call.1} parent=1 // pred_fallthru
      _
    %v60 = vld [vmem:[#allocation2] sm:$0xff]
    %v61 = vld [vmem:[#allocation2 + $0x8] sm:$0xf]
    %v62 = vld [vmem:[#allocation3] sm:$0xff]
    %v63 = vld [vmem:[#allocation3 + $0x8] sm:$0xff]
    %v64 = vld [vmem:[#allocation3 + $0x10] sm:$0xff]
    %v65 = vld [vmem:[#allocation3 + $0x18] sm:$0xff]
    %v66 = vld [vmem:[#allocation3 + $0x20] sm:$0xff]
    %v67 = vld [vmem:[#allocation3 + $0x28] sm:$0xff]
    %v68 = vld [vmem:[#allocation3 + $0x30] sm:$0xff]
    %v69 = vld [vmem:[#allocation3 + $0x38] sm:$0xff]
    %v70 = vld [vmem:[#allocation3 + $0x40] sm:$0xff]
    %v71 = vld [vmem:[#allocation3 + $0x48] sm:$0xff]
    %v72 = vld [vmem:[#allocation3 + $0x50] sm:$0xff]
    %v73 = vld [vmem:[#allocation3 + $0x58] sm:$0xff]
    %v74 = vld [vmem:[#allocation3 + $0x60] sm:$0xff]
    %v75 = vld [vmem:[#allocation3 + $0x68] sm:$0xff]
    %v76 = vld [vmem:[#allocation3 + $0x70] sm:$0xff]
    %v77 = vld [vmem:[#allocation3 + $0x78] sm:$0xff]
    %v78 = vld [vmem:[#allocation3 + $0x80] sm:$0xff]
    %v79 = vld [vmem:[#allocation3 + $0x88] sm:$0xff]
    %v80 = vld [vmem:[#allocation3 + $0x90] sm:$0xff]
    %v81 = vld [vmem:[#allocation3 + $0x98] sm:$0xff]
    %v82 = vld [vmem:[#allocation3 + $0xa0] sm:$0xff]
    %v83 = vld [vmem:[#allocation3 + $0xa8] sm:$0xff]
    %v84 = vld [vmem:[#allocation3 + $0xb0] sm:$0xff]
    %v85 = vld [vmem:[#allocation3 + $0xb8] sm:$0xff]
    %v86 = vadd.f32 %v62, %v68
    %v87 = vrot.slane %v86, 4
    %v88 = vadd.f32 %v86, %v87
    %v89 = vrot.slane %v88, 2
    %v90 = vadd.f32 %v88, %v89
    %v91 = vrot.slane %v90, 1
    %v92 = vadd.f32 %v90, %v91
    %v93 = vadd.f32 %v63, %v69
    %v94 = vrot.slane %v93, 4
    %v95 = vadd.f32 %v93, %v94
    %v96 = vrot.slane %v95, 2
    %v97 = vadd.f32 %v95, %v96
    %v98 = vrot.slane %v97, 1
    %v99 = vadd.f32 %v97, %v98
    %v100 = vadd.f32 %v64, %v70
    %v101 = vrot.slane %v100, 4
    %v102 = vadd.f32 %v100, %v101
    %v103 = vrot.slane %v102, 2
    %v104 = vadd.f32 %v102, %v103
    %v105 = vrot.slane %v104, 1
    %v106 = vadd.f32 %v104, %v105
    %v107 = vadd.f32 %v65, %v71
    %v108 = vrot.slane %v107, 4
    %v109 = vadd.f32 %v107, %v108
    %v110 = vrot.slane %v109, 2
    %v111 = vadd.f32 %v109, %v110
    %v112 = vrot.slane %v111, 1
    %v113 = vadd.f32 %v111, %v112
    %v114 = vadd.f32 %v66, %v72
    %v115 = vrot.slane %v114, 4
    %v116 = vadd.f32 %v114, %v115
    %v117 = vrot.slane %v116, 2
    %v118 = vadd.f32 %v116, %v117
    %v119 = vrot.slane %v118, 1
    %v120 = vadd.f32 %v118, %v119
    %v121 = vadd.f32 %v67, %v73
    %v122 = vrot.slane %v121, 4
    %v123 = vadd.f32 %v121, %v122
    %v124 = vrot.slane %v123, 2
    %v125 = vadd.f32 %v123, %v124
    %v126 = vrot.slane %v125, 1
    %v127 = vadd.f32 %v125, %v126
    %v128 = vadd.f32 %v74, %v80
    %v129 = vrot.slane %v128, 4
    %v130 = vadd.f32 %v128, %v129
    %v131 = vrot.slane %v130, 2
    %v132 = vadd.f32 %v130, %v131
    %v133 = vrot.slane %v132, 1
    %v134 = vadd.f32 %v132, %v133
    %v135 = vadd.f32 %v75, %v81
    %v136 = vrot.slane %v135, 4
    %v137 = vadd.f32 %v135, %v136
    %v138 = vrot.slane %v137, 2
    %v139 = vadd.f32 %v137, %v138
    %v140 = vrot.slane %v139, 1
    %v141 = vadd.f32 %v139, %v140
    %v142 = vadd.f32 %v76, %v82
    %v143 = vrot.slane %v142, 4
    %v144 = vadd.f32 %v142, %v143
    %v145 = vrot.slane %v144, 2
    %v146 = vadd.f32 %v144, %v145
    %v147 = vrot.slane %v146, 1
    %v148 = vadd.f32 %v146, %v147
    %v149 = vadd.f32 %v77, %v83
    %v150 = vrot.slane %v149, 4
    %v151 = vadd.f32 %v149, %v150
    %v152 = vrot.slane %v151, 2
    %v153 = vadd.f32 %v151, %v152
    %v154 = vrot.slane %v153, 1
    %v155 = vadd.f32 %v153, %v154
    %v156 = vadd.f32 %v78, %v84
    %v157 = vrot.slane %v156, 4
    %v158 = vadd.f32 %v156, %v157
    %v159 = vrot.slane %v158, 2
    %v160 = vadd.f32 %v158, %v159
    %v161 = vrot.slane %v160, 1
    %v162 = vadd.f32 %v160, %v161
    %v163 = vadd.f32 %v79, %v85
    %v164 = vrot.slane %v163, 4
    %v165 = vadd.f32 %v163, %v164
    %v166 = vrot.slane %v165, 2
    %v167 = vadd.f32 %v165, %v166
    %v168 = vrot.slane %v167, 1
    %v169 = vadd.f32 %v167, %v168
    %v182 = vcombine.low %v92, %v99
    %v183 = vcombine.low %v106, %v113
    %v185 = vunpack.c.l.s4 1983009808
    %v186 = vunpack.c.0.s8 %v185
    %v187 = vlaneseq
    %v188 = vshrl.u32 %v187, 7
    %v189 = vsub.s32 %v186, %v188
    %v190 = vrot.slane %v182, %v189
    %v192 = vunpack.c.l.s4 1983009808
    %v193 = vunpack.c.0.s8 %v192
    %v194 = vlaneseq
    %v195 = vshrl.u32 %v194, 7
    %v196 = vsub.s32 %v193, %v195
    %v197 = vrot.slane %v183, %v196
    %v198 = vcombine.low %v190, %v197
    %v199 = vcombine.low %v120, %v127
    %v201 = vunpack.c.l.s4 1983009808
    %v202 = vunpack.c.0.s8 %v201
    %v203 = vlaneseq
    %v204 = vshrl.u32 %v203, 7
    %v205 = vsub.s32 %v202, %v204
    %v206 = vrot.slane %v199, %v205
    %v207 = vcombine.low %v134, %v141
    %v208 = vcombine.low %v148, %v155
    %v210 = vunpack.c.l.s4 1983009808
    %v211 = vunpack.c.0.s8 %v210
    %v212 = vlaneseq
    %v213 = vshrl.u32 %v212, 7
    %v214 = vsub.s32 %v211, %v213
    %v215 = vrot.slane %v207, %v214
    %v217 = vunpack.c.l.s4 1983009808
    %v218 = vunpack.c.0.s8 %v217
    %v219 = vlaneseq
    %v220 = vshrl.u32 %v219, 7
    %v221 = vsub.s32 %v218, %v220
    %v222 = vrot.slane %v208, %v221
    %v223 = vcombine.low %v215, %v222
    %v224 = vcombine.low %v162, %v169
    %v226 = vunpack.c.l.s4 1983009808
    %v227 = vunpack.c.0.s8 %v226
    %v228 = vlaneseq
    %v229 = vshrl.u32 %v228, 7
    %v230 = vsub.s32 %v227, %v229
    %v231 = vrot.slane %v224, %v230
    %vm232 = vcmask 1044484
    %v233 = vsel %vm232, %v198, %v198
    %vm234 = vcmask 1046534
    %v235 = vsel %vm234, %v198, %v233
    %v236 = vrot.slane %v223, 7
    %vm237 = vcmask 1041409
    %v238 = vsel %vm237, %v236, %v235
    %vm239 = vcmask 1043459
    %v240 = vsel %vm239, %v236, %v238
    %vm241 = vcmask 1045509
    %v242 = vsel %vm241, %v236, %v240
    %vm243 = vcmask 1047559
    %v244 = vsel %vm243, %v236, %v242
    %v245 = vsel %vm232, %v206, %v206
    %v246 = vsel %vm234, %v206, %v245
    %v247 = vrot.slane %v231, 7
    %v248 = vsel %vm237, %v247, %v246
    %v249 = vsel %vm239, %v247, %v248
    %v250 = vsel %vm241, %v247, %v249
    %v251 = vsel %vm243, %v247, %v250
    %v254 = vadd.f32 %v60, %v244
    %v255 = vadd.f32 %v61, %v251
    %256 = vst [vmem:[#allocation2] sm:$0xff] %v254
    %257 = vst [vmem:[#allocation2 + $0x8] sm:$0xf] %v255
    // Predicated region
    $region30: #{tpu_custom_call.1} parent=1 // pred_check
      %p258 = pneg %p54
    $region31: #{tpu_custom_call.1} parent=1 // pred_check_branch
      %260 = sbr.rel (%p258) target = $region33
    $region32: #{tpu_custom_call.1} parent=1 // pred_region
      %v261 = vld [vmem:[#allocation2] sm:$0xff]
      %v262 = vld [vmem:[#allocation2 + $0x8] sm:$0xf]
      %v263 = vmul.f32 %v261, 0.0625
      %v264 = vmul.f32 %v262, 0.0625
      %v265 = vld [vmem:[#allocation6] sm:$0xff]
      %v266 = vld [vmem:[#allocation6 + $0x8] sm:$0xff]
      %v267 = vld [vmem:[#allocation6 + $0x10] sm:$0xff]
      %v268 = vld [vmem:[#allocation6 + $0x18] sm:$0xff]
      %v269 = vld [vmem:[#allocation6 + $0x20] sm:$0xff]
      %v270 = vld [vmem:[#allocation6 + $0x28] sm:$0xff]
      %v271 = vld [vmem:[#allocation6 + $0x30] sm:$0xff]
      %v272 = vld [vmem:[#allocation6 + $0x38] sm:$0xff]
      %v273 = vld [vmem:[#allocation6 + $0x40] sm:$0xff]
      %v274 = vld [vmem:[#allocation6 + $0x48] sm:$0xff]
      %v275 = vld [vmem:[#allocation6 + $0x50] sm:$0xff]
      %v276 = vld [vmem:[#allocation6 + $0x58] sm:$0xff]
      %v277 = vld [vmem:[#allocation6 + $0x60] sm:$0xff]
      %v278 = vld [vmem:[#allocation6 + $0x68] sm:$0xff]
      %v279 = vld [vmem:[#allocation6 + $0x70] sm:$0xff]
      %v280 = vld [vmem:[#allocation6 + $0x78] sm:$0xff]
      %v281 = vld [vmem:[#allocation6 + $0x80] sm:$0xff]
      %v282 = vld [vmem:[#allocation6 + $0x88] sm:$0xff]
      %v283 = vld [vmem:[#allocation6 + $0x90] sm:$0xff]
      %v284 = vld [vmem:[#allocation6 + $0x98] sm:$0xff]
      %v285 = vld [vmem:[#allocation6 + $0xa0] sm:$0xff]
      %v286 = vld [vmem:[#allocation6 + $0xa8] sm:$0xff]
      %v287 = vld [vmem:[#allocation6 + $0xb0] sm:$0xff]
      %v288 = vld [vmem:[#allocation6 + $0xb8] sm:$0xff]
      %v289 = vld [vmem:[#allocation6 + $0xc0] sm:$0xff]
      %v290 = vld [vmem:[#allocation6 + $0xc8] sm:$0xff]
      %v291 = vld [vmem:[#allocation6 + $0xd0] sm:$0xff]
      %v292 = vld [vmem:[#allocation6 + $0xd8] sm:$0xff]
      %v293 = vld [vmem:[#allocation6 + $0xe0] sm:$0xff]
      %v294 = vld [vmem:[#allocation6 + $0xe8] sm:$0xff]
      %v295 = vld [vmem:[#allocation6 + $0xf0] sm:$0xff]
      %v296 = vld [vmem:[#allocation6 + $0xf8] sm:$0xff]
      %v297 = vld [vmem:[#allocation6 + $0x100] sm:$0xff]
      %v298 = vld [vmem:[#allocation6 + $0x108] sm:$0xff]
      %v299 = vld [vmem:[#allocation6 + $0x110] sm:$0xff]
      %v300 = vld [vmem:[#allocation6 + $0x118] sm:$0xff]
      %v301 = vld [vmem:[#allocation6 + $0x120] sm:$0xff]
      %v302 = vld [vmem:[#allocation6 + $0x128] sm:$0xff]
      %v303 = vld [vmem:[#allocation6 + $0x130] sm:$0xff]
      %v304 = vld [vmem:[#allocation6 + $0x138] sm:$0xff]
      %v305 = vld [vmem:[#allocation6 + $0x140] sm:$0xff]
      %v306 = vld [vmem:[#allocation6 + $0x148] sm:$0xff]
      %v307 = vld [vmem:[#allocation6 + $0x150] sm:$0xff]
      %v308 = vld [vmem:[#allocation6 + $0x158] sm:$0xff]
      %v309 = vld [vmem:[#allocation6 + $0x160] sm:$0xff]
      %v310 = vld [vmem:[#allocation6 + $0x168] sm:$0xff]
      %v311 = vld [vmem:[#allocation6 + $0x170] sm:$0xff]
      %v312 = vld [vmem:[#allocation6 + $0x178] sm:$0xff]
      %v313 = vld [vmem:[#allocation6 + $0x180] sm:$0xff]
      %v314 = vld [vmem:[#allocation6 + $0x188] sm:$0xff]
      %v315 = vld [vmem:[#allocation6 + $0x190] sm:$0xff]
      %v316 = vld [vmem:[#allocation6 + $0x198] sm:$0xff]
      %v317 = vld [vmem:[#allocation6 + $0x1a0] sm:$0xff]
      %v318 = vld [vmem:[#allocation6 + $0x1a8] sm:$0xff]
      %v319 = vld [vmem:[#allocation6 + $0x1b0] sm:$0xff]
      %v320 = vld [vmem:[#allocation6 + $0x1b8] sm:$0xff]
      %v321 = vld [vmem:[#allocation6 + $0x1c0] sm:$0xff]
      %v322 = vld [vmem:[#allocation6 + $0x1c8] sm:$0xff]
      %v323 = vld [vmem:[#allocation6 + $0x1d0] sm:$0xff]
      %v324 = vld [vmem:[#allocation6 + $0x1d8] sm:$0xff]
      %v325 = vld [vmem:[#allocation6 + $0x1e0] sm:$0xff]
      %v326 = vld [vmem:[#allocation6 + $0x1e8] sm:$0xff]
      %v327 = vld [vmem:[#allocation6 + $0x1f0] sm:$0xff]
      %v328 = vld [vmem:[#allocation6 + $0x1f8] sm:$0xff]
      %v329 = vld [vmem:[#allocation6 + $0x200] sm:$0xff]
      %v330 = vld [vmem:[#allocation6 + $0x208] sm:$0xff]
      %v331 = vld [vmem:[#allocation6 + $0x210] sm:$0xff]
      %v332 = vld [vmem:[#allocation6 + $0x218] sm:$0xff]
      %v333 = vld [vmem:[#allocation6 + $0x220] sm:$0xff]
      %v334 = vld [vmem:[#allocation6 + $0x228] sm:$0xff]
      %v335 = vld [vmem:[#allocation6 + $0x230] sm:$0xff]
      %v336 = vld [vmem:[#allocation6 + $0x238] sm:$0xff]
      %v337 = vld [vmem:[#allocation6 + $0x240] sm:$0xff]
      %v338 = vld [vmem:[#allocation6 + $0x248] sm:$0xff]
      %v339 = vld [vmem:[#allocation6 + $0x250] sm:$0xff]
      %v340 = vld [vmem:[#allocation6 + $0x258] sm:$0xff]
      %v341 = vld [vmem:[#allocation6 + $0x260] sm:$0xff]
      %v342 = vld [vmem:[#allocation6 + $0x268] sm:$0xff]
      %v343 = vld [vmem:[#allocation6 + $0x270] sm:$0xff]
      %v344 = vld [vmem:[#allocation6 + $0x278] sm:$0xff]
      %v345 = vld [vmem:[#allocation6 + $0x280] sm:$0xff]
      %v346 = vld [vmem:[#allocation6 + $0x288] sm:$0xff]
      %v347 = vld [vmem:[#allocation6 + $0x290] sm:$0xff]
      %v348 = vld [vmem:[#allocation6 + $0x298] sm:$0xff]
      %v349 = vld [vmem:[#allocation6 + $0x2a0] sm:$0xff]
      %v350 = vld [vmem:[#allocation6 + $0x2a8] sm:$0xff]
      %v351 = vld [vmem:[#allocation6 + $0x2b0] sm:$0xff]
      %v352 = vld [vmem:[#allocation6 + $0x2b8] sm:$0xff]
      %v353 = vld [vmem:[#allocation6 + $0x2c0] sm:$0xff]
      %v354 = vld [vmem:[#allocation6 + $0x2c8] sm:$0xff]
      %v355 = vld [vmem:[#allocation6 + $0x2d0] sm:$0xff]
      %v356 = vld [vmem:[#allocation6 + $0x2d8] sm:$0xff]
      %v357 = vld [vmem:[#allocation6 + $0x2e0] sm:$0xff]
      %v358 = vld [vmem:[#allocation6 + $0x2e8] sm:$0xff]
      %v359 = vld [vmem:[#allocation6 + $0x2f0] sm:$0xff]
      %v360 = vld [vmem:[#allocation6 + $0x2f8] sm:$0xff]
      %v361 = vld [vmem:[#allocation6 + $0x300] sm:$0xff]
      %v362 = vld [vmem:[#allocation6 + $0x308] sm:$0xff]
      %v363 = vld [vmem:[#allocation6 + $0x310] sm:$0xff]
      %v364 = vld [vmem:[#allocation6 + $0x318] sm:$0xff]
      %v365 = vld [vmem:[#allocation6 + $0x320] sm:$0xff]
      %v366 = vld [vmem:[#allocation6 + $0x328] sm:$0xff]
      %v367 = vld [vmem:[#allocation6 + $0x330] sm:$0xff]
      %v368 = vld [vmem:[#allocation6 + $0x338] sm:$0xff]
      %v369 = vld [vmem:[#allocation6 + $0x340] sm:$0xff]
      %v370 = vld [vmem:[#allocation6 + $0x348] sm:$0xff]
      %v371 = vld [vmem:[#allocation6 + $0x350] sm:$0xff]
      %v372 = vld [vmem:[#allocation6 + $0x358] sm:$0xff]
      %v373 = vld [vmem:[#allocation6 + $0x360] sm:$0xff]
      %v374 = vld [vmem:[#allocation6 + $0x368] sm:$0xff]
      %v375 = vld [vmem:[#allocation6 + $0x370] sm:$0xff]
      %v376 = vld [vmem:[#allocation6 + $0x378] sm:$0xff]
      %v377 = vld [vmem:[#allocation6 + $0x380] sm:$0xff]
      %v378 = vld [vmem:[#allocation6 + $0x388] sm:$0xff]
      %v379 = vld [vmem:[#allocation6 + $0x390] sm:$0xff]
      %v380 = vld [vmem:[#allocation6 + $0x398] sm:$0xff]
      %v381 = vld [vmem:[#allocation6 + $0x3a0] sm:$0xff]
      %v382 = vld [vmem:[#allocation6 + $0x3a8] sm:$0xff]
      %v383 = vld [vmem:[#allocation6 + $0x3b0] sm:$0xff]
      %v384 = vld [vmem:[#allocation6 + $0x3b8] sm:$0xff]
      %v385 = vld [vmem:[#allocation6 + $0x3c0] sm:$0xff]
      %v386 = vld [vmem:[#allocation6 + $0x3c8] sm:$0xff]
      %v387 = vld [vmem:[#allocation6 + $0x3d0] sm:$0xff]
      %v388 = vld [vmem:[#allocation6 + $0x3d8] sm:$0xff]
      %v389 = vld [vmem:[#allocation6 + $0x3e0] sm:$0xff]
      %v390 = vld [vmem:[#allocation6 + $0x3e8] sm:$0xff]
      %v391 = vld [vmem:[#allocation6 + $0x3f0] sm:$0xff]
      %v392 = vld [vmem:[#allocation6 + $0x3f8] sm:$0xff]
      %v393 = vld [vmem:[#allocation6 + $0x400] sm:$0xff]
      %v394 = vld [vmem:[#allocation6 + $0x408] sm:$0xff]
      %v395 = vld [vmem:[#allocation6 + $0x410] sm:$0xff]
      %v396 = vld [vmem:[#allocation6 + $0x418] sm:$0xff]
      %v397 = vld [vmem:[#allocation6 + $0x420] sm:$0xff]
      %v398 = vld [vmem:[#allocation6 + $0x428] sm:$0xff]
      %v399 = vld [vmem:[#allocation6 + $0x430] sm:$0xff]
      %v400 = vld [vmem:[#allocation6 + $0x438] sm:$0xff]
      %v401 = vld [vmem:[#allocation6 + $0x440] sm:$0xff]
      %v402 = vld [vmem:[#allocation6 + $0x448] sm:$0xff]
      %v403 = vld [vmem:[#allocation6 + $0x450] sm:$0xff]
      %v404 = vld [vmem:[#allocation6 + $0x458] sm:$0xff]
      %v405 = vld [vmem:[#allocation6 + $0x460] sm:$0xff]
      %v406 = vld [vmem:[#allocation6 + $0x468] sm:$0xff]
      %v407 = vld [vmem:[#allocation6 + $0x470] sm:$0xff]
      %v408 = vld [vmem:[#allocation6 + $0x478] sm:$0xff]
      %v409 = vld [vmem:[#allocation6 + $0x480] sm:$0xff]
      %v410 = vld [vmem:[#allocation6 + $0x488] sm:$0xff]
      %v411 = vld [vmem:[#allocation6 + $0x490] sm:$0xff]
      %v412 = vld [vmem:[#allocation6 + $0x498] sm:$0xff]
      %v413 = vld [vmem:[#allocation6 + $0x4a0] sm:$0xff]
      %v414 = vld [vmem:[#allocation6 + $0x4a8] sm:$0xff]
      %v415 = vld [vmem:[#allocation6 + $0x4b0] sm:$0xff]
      %v416 = vld [vmem:[#allocation6 + $0x4b8] sm:$0xff]
      %v417 = vld [vmem:[#allocation6 + $0x4c0] sm:$0xff]
      %v418 = vld [vmem:[#allocation6 + $0x4c8] sm:$0xff]
      %v419 = vld [vmem:[#allocation6 + $0x4d0] sm:$0xff]
      %v420 = vld [vmem:[#allocation6 + $0x4d8] sm:$0xff]
      %v421 = vld [vmem:[#allocation6 + $0x4e0] sm:$0xff]
      %v422 = vld [vmem:[#allocation6 + $0x4e8] sm:$0xff]
      %v423 = vld [vmem:[#allocation6 + $0x4f0] sm:$0xff]
      %v424 = vld [vmem:[#allocation6 + $0x4f8] sm:$0xff]
      %v425 = vld [vmem:[#allocation6 + $0x500] sm:$0xff]
      %v426 = vld [vmem:[#allocation6 + $0x508] sm:$0xff]
      %v427 = vld [vmem:[#allocation6 + $0x510] sm:$0xff]
      %v428 = vld [vmem:[#allocation6 + $0x518] sm:$0xff]
      %v429 = vld [vmem:[#allocation6 + $0x520] sm:$0xff]
      %v430 = vld [vmem:[#allocation6 + $0x528] sm:$0xff]
      %v431 = vld [vmem:[#allocation6 + $0x530] sm:$0xff]
      %v432 = vld [vmem:[#allocation6 + $0x538] sm:$0xff]
      %v433 = vld [vmem:[#allocation6 + $0x540] sm:$0xff]
      %v434 = vld [vmem:[#allocation6 + $0x548] sm:$0xff]
      %v435 = vld [vmem:[#allocation6 + $0x550] sm:$0xff]
      %v436 = vld [vmem:[#allocation6 + $0x558] sm:$0xff]
      %v437 = vld [vmem:[#allocation6 + $0x560] sm:$0xff]
      %v438 = vld [vmem:[#allocation6 + $0x568] sm:$0xff]
      %v439 = vld [vmem:[#allocation6 + $0x570] sm:$0xff]
      %v440 = vld [vmem:[#allocation6 + $0x578] sm:$0xff]
      %v441 = vld [vmem:[#allocation6 + $0x580] sm:$0xff]
      %v442 = vld [vmem:[#allocation6 + $0x588] sm:$0xff]
      %v443 = vld [vmem:[#allocation6 + $0x590] sm:$0xff]
      %v444 = vld [vmem:[#allocation6 + $0x598] sm:$0xff]
      %v445 = vld [vmem:[#allocation6 + $0x5a0] sm:$0xff]
      %v446 = vld [vmem:[#allocation6 + $0x5a8] sm:$0xff]
      %v447 = vld [vmem:[#allocation6 + $0x5b0] sm:$0xff]
      %v448 = vld [vmem:[#allocation6 + $0x5b8] sm:$0xff]
      %v449 = vld [vmem:[#allocation6 + $0x5c0] sm:$0xff]
      %v450 = vld [vmem:[#allocation6 + $0x5c8] sm:$0xff]
      %v451 = vld [vmem:[#allocation6 + $0x5d0] sm:$0xff]
      %v452 = vld [vmem:[#allocation6 + $0x5d8] sm:$0xff]
      %v453 = vld [vmem:[#allocation6 + $0x5e0] sm:$0xff]
      %v454 = vld [vmem:[#allocation6 + $0x5e8] sm:$0xff]
      %v455 = vld [vmem:[#allocation6 + $0x5f0] sm:$0xff]
      %v456 = vld [vmem:[#allocation6 + $0x5f8] sm:$0xff]
      %v457 = vld [vmem:[#allocation6 + $0x600] sm:$0xff]
      %v458 = vld [vmem:[#allocation6 + $0x608] sm:$0xff]
      %v459 = vld [vmem:[#allocation6 + $0x610] sm:$0xff]
      %v460 = vld [vmem:[#allocation6 + $0x618] sm:$0xff]
      %v461 = vld [vmem:[#allocation6 + $0x620] sm:$0xff]
      %v462 = vld [vmem:[#allocation6 + $0x628] sm:$0xff]
      %v463 = vld [vmem:[#allocation6 + $0x630] sm:$0xff]
      %v464 = vld [vmem:[#allocation6 + $0x638] sm:$0xff]
      %v465 = vld [vmem:[#allocation6 + $0x640] sm:$0xff]
      %v466 = vld [vmem:[#allocation6 + $0x648] sm:$0xff]
      %v467 = vld [vmem:[#allocation6 + $0x650] sm:$0xff]
      %v468 = vld [vmem:[#allocation6 + $0x658] sm:$0xff]
      %v469 = vld [vmem:[#allocation6 + $0x660] sm:$0xff]
      %v470 = vld [vmem:[#allocation6 + $0x668] sm:$0xff]
      %v471 = vld [vmem:[#allocation6 + $0x670] sm:$0xff]
      %v472 = vld [vmem:[#allocation6 + $0x678] sm:$0xff]
      %v473 = vld [vmem:[#allocation6 + $0x680] sm:$0xff]
      %v474 = vld [vmem:[#allocation6 + $0x688] sm:$0xff]
      %v475 = vld [vmem:[#allocation6 + $0x690] sm:$0xff]
      %v476 = vld [vmem:[#allocation6 + $0x698] sm:$0xff]
      %v477 = vld [vmem:[#allocation6 + $0x6a0] sm:$0xff]
      %v478 = vld [vmem:[#allocation6 + $0x6a8] sm:$0xff]
      %v479 = vld [vmem:[#allocation6 + $0x6b0] sm:$0xff]
      %v480 = vld [vmem:[#allocation6 + $0x6b8] sm:$0xff]
      %v481 = vld [vmem:[#allocation6 + $0x6c0] sm:$0xff]
      %v482 = vld [vmem:[#allocation6 + $0x6c8] sm:$0xff]
      %v483 = vld [vmem:[#allocation6 + $0x6d0] sm:$0xff]
      %v484 = vld [vmem:[#allocation6 + $0x6d8] sm:$0xff]
      %v485 = vld [vmem:[#allocation6 + $0x6e0] sm:$0xff]
      %v486 = vld [vmem:[#allocation6 + $0x6e8] sm:$0xff]
      %v487 = vld [vmem:[#allocation6 + $0x6f0] sm:$0xff]
      %v488 = vld [vmem:[#allocation6 + $0x6f8] sm:$0xff]
      %v489 = vld [vmem:[#allocation6 + $0x700] sm:$0xff]
      %v490 = vld [vmem:[#allocation6 + $0x708] sm:$0xff]
      %v491 = vld [vmem:[#allocation6 + $0x710] sm:$0xff]
      %v492 = vld [vmem:[#allocation6 + $0x718] sm:$0xff]
      %v493 = vld [vmem:[#allocation6 + $0x720] sm:$0xff]
      %v494 = vld [vmem:[#allocation6 + $0x728] sm:$0xff]
      %v495 = vld [vmem:[#allocation6 + $0x730] sm:$0xff]
      %v496 = vld [vmem:[#allocation6 + $0x738] sm:$0xff]
      %v497 = vld [vmem:[#allocation6 + $0x740] sm:$0xff]
      %v498 = vld [vmem:[#allocation6 + $0x748] sm:$0xff]
      %v499 = vld [vmem:[#allocation6 + $0x750] sm:$0xff]
      %v500 = vld [vmem:[#allocation6 + $0x758] sm:$0xff]
      %v501 = vld [vmem:[#allocation6 + $0x760] sm:$0xff]
      %v502 = vld [vmem:[#allocation6 + $0x768] sm:$0xff]
      %v503 = vld [vmem:[#allocation6 + $0x770] sm:$0xff]
      %v504 = vld [vmem:[#allocation6 + $0x778] sm:$0xff]
      %v505 = vld [vmem:[#allocation6 + $0x780] sm:$0xff]
      %v506 = vld [vmem:[#allocation6 + $0x788] sm:$0xff]
      %v507 = vld [vmem:[#allocation6 + $0x790] sm:$0xff]
      %v508 = vld [vmem:[#allocation6 + $0x798] sm:$0xff]
      %v509 = vld [vmem:[#allocation6 + $0x7a0] sm:$0xff]
      %v510 = vld [vmem:[#allocation6 + $0x7a8] sm:$0xff]
      %v511 = vld [vmem:[#allocation6 + $0x7b0] sm:$0xff]
      %v512 = vld [vmem:[#allocation6 + $0x7b8] sm:$0xff]
      %v513 = vld [vmem:[#allocation6 + $0x7c0] sm:$0xff]
      %v514 = vld [vmem:[#allocation6 + $0x7c8] sm:$0xff]
      %v515 = vld [vmem:[#allocation6 + $0x7d0] sm:$0xff]
      %v516 = vld [vmem:[#allocation6 + $0x7d8] sm:$0xff]
      %v517 = vld [vmem:[#allocation6 + $0x7e0] sm:$0xff]
      %v518 = vld [vmem:[#allocation6 + $0x7e8] sm:$0xff]
      %v519 = vld [vmem:[#allocation6 + $0x7f0] sm:$0xff]
      %v520 = vld [vmem:[#allocation6 + $0x7f8] sm:$0xff]
      %v521 = vld [vmem:[#allocation6 + $0x800] sm:$0xff]
      %v522 = vld [vmem:[#allocation6 + $0x808] sm:$0xff]
      %v523 = vld [vmem:[#allocation6 + $0x810] sm:$0xff]
      %v524 = vld [vmem:[#allocation6 + $0x818] sm:$0xff]
      %v525 = vld [vmem:[#allocation6 + $0x820] sm:$0xff]
      %v526 = vld [vmem:[#allocation6 + $0x828] sm:$0xff]
      %v527 = vld [vmem:[#allocation6 + $0x830] sm:$0xff]
      %v528 = vld [vmem:[#allocation6 + $0x838] sm:$0xff]
      %v529 = vld [vmem:[#allocation6 + $0x840] sm:$0xff]
      %v530 = vld [vmem:[#allocation6 + $0x848] sm:$0xff]
      %v531 = vld [vmem:[#allocation6 + $0x850] sm:$0xff]
      %v532 = vld [vmem:[#allocation6 + $0x858] sm:$0xff]
      %v533 = vld [vmem:[#allocation6 + $0x860] sm:$0xff]
      %v534 = vld [vmem:[#allocation6 + $0x868] sm:$0xff]
      %v535 = vld [vmem:[#allocation6 + $0x870] sm:$0xff]
      %v536 = vld [vmem:[#allocation6 + $0x878] sm:$0xff]
      %v537 = vld [vmem:[#allocation6 + $0x880] sm:$0xff]
      %v538 = vld [vmem:[#allocation6 + $0x888] sm:$0xff]
      %v539 = vld [vmem:[#allocation6 + $0x890] sm:$0xff]
      %v540 = vld [vmem:[#allocation6 + $0x898] sm:$0xff]
      %v541 = vld [vmem:[#allocation6 + $0x8a0] sm:$0xff]
      %v542 = vld [vmem:[#allocation6 + $0x8a8] sm:$0xff]
      %v543 = vld [vmem:[#allocation6 + $0x8b0] sm:$0xff]
      %v544 = vld [vmem:[#allocation6 + $0x8b8] sm:$0xff]
      %v545 = vld [vmem:[#allocation6 + $0x8c0] sm:$0xff]
      %v546 = vld [vmem:[#allocation6 + $0x8c8] sm:$0xff]
      %v547 = vld [vmem:[#allocation6 + $0x8d0] sm:$0xff]
      %v548 = vld [vmem:[#allocation6 + $0x8d8] sm:$0xff]
      %v549 = vld [vmem:[#allocation6 + $0x8e0] sm:$0xff]
      %v550 = vld [vmem:[#allocation6 + $0x8e8] sm:$0xff]
      %v551 = vld [vmem:[#allocation6 + $0x8f0] sm:$0xff]
      %v552 = vld [vmem:[#allocation6 + $0x8f8] sm:$0xff]
      %v553 = vld [vmem:[#allocation6 + $0x900] sm:$0xff]
      %v554 = vld [vmem:[#allocation6 + $0x908] sm:$0xff]
      %v555 = vld [vmem:[#allocation6 + $0x910] sm:$0xff]
      %v556 = vld [vmem:[#allocation6 + $0x918] sm:$0xff]
      %v557 = vld [vmem:[#allocation6 + $0x920] sm:$0xff]
      %v558 = vld [vmem:[#allocation6 + $0x928] sm:$0xff]
      %v559 = vld [vmem:[#allocation6 + $0x930] sm:$0xff]
      %v560 = vld [vmem:[#allocation6 + $0x938] sm:$0xff]
      %v561 = vld [vmem:[#allocation6 + $0x940] sm:$0xff]
      %v562 = vld [vmem:[#allocation6 + $0x948] sm:$0xff]
      %v563 = vld [vmem:[#allocation6 + $0x950] sm:$0xff]
      %v564 = vld [vmem:[#allocation6 + $0x958] sm:$0xff]
      %v565 = vld [vmem:[#allocation6 + $0x960] sm:$0xff]
      %v566 = vld [vmem:[#allocation6 + $0x968] sm:$0xff]
      %v567 = vld [vmem:[#allocation6 + $0x970] sm:$0xff]
      %v568 = vld [vmem:[#allocation6 + $0x978] sm:$0xff]
      %v569 = vld [vmem:[#allocation6 + $0x980] sm:$0xff]
      %v570 = vld [vmem:[#allocation6 + $0x988] sm:$0xff]
      %v571 = vld [vmem:[#allocation6 + $0x990] sm:$0xff]
      %v572 = vld [vmem:[#allocation6 + $0x998] sm:$0xff]
      %v573 = vld [vmem:[#allocation6 + $0x9a0] sm:$0xff]
      %v574 = vld [vmem:[#allocation6 + $0x9a8] sm:$0xff]
      %v575 = vld [vmem:[#allocation6 + $0x9b0] sm:$0xff]
      %v576 = vld [vmem:[#allocation6 + $0x9b8] sm:$0xff]
      %v577 = vld [vmem:[#allocation6 + $0x9c0] sm:$0xff]
      %v578 = vld [vmem:[#allocation6 + $0x9c8] sm:$0xff]
      %v579 = vld [vmem:[#allocation6 + $0x9d0] sm:$0xff]
      %v580 = vld [vmem:[#allocation6 + $0x9d8] sm:$0xff]
      %v581 = vld [vmem:[#allocation6 + $0x9e0] sm:$0xff]
      %v582 = vld [vmem:[#allocation6 + $0x9e8] sm:$0xff]
      %v583 = vld [vmem:[#allocation6 + $0x9f0] sm:$0xff]
      %v584 = vld [vmem:[#allocation6 + $0x9f8] sm:$0xff]
      %v585 = vld [vmem:[#allocation6 + $0xa00] sm:$0xff]
      %v586 = vld [vmem:[#allocation6 + $0xa08] sm:$0xff]
      %v587 = vld [vmem:[#allocation6 + $0xa10] sm:$0xff]
      %v588 = vld [vmem:[#allocation6 + $0xa18] sm:$0xff]
      %v589 = vld [vmem:[#allocation6 + $0xa20] sm:$0xff]
      %v590 = vld [vmem:[#allocation6 + $0xa28] sm:$0xff]
      %v591 = vld [vmem:[#allocation6 + $0xa30] sm:$0xff]
      %v592 = vld [vmem:[#allocation6 + $0xa38] sm:$0xff]
      %v593 = vld [vmem:[#allocation6 + $0xa40] sm:$0xff]
      %v594 = vld [vmem:[#allocation6 + $0xa48] sm:$0xff]
      %v595 = vld [vmem:[#allocation6 + $0xa50] sm:$0xff]
      %v596 = vld [vmem:[#allocation6 + $0xa58] sm:$0xff]
      %v597 = vld [vmem:[#allocation6 + $0xa60] sm:$0xff]
      %v598 = vld [vmem:[#allocation6 + $0xa68] sm:$0xff]
      %v599 = vld [vmem:[#allocation6 + $0xa70] sm:$0xff]
      %v600 = vld [vmem:[#allocation6 + $0xa78] sm:$0xff]
      %v601 = vld [vmem:[#allocation6 + $0xa80] sm:$0xff]
      %v602 = vld [vmem:[#allocation6 + $0xa88] sm:$0xff]
      %v603 = vld [vmem:[#allocation6 + $0xa90] sm:$0xff]
      %v604 = vld [vmem:[#allocation6 + $0xa98] sm:$0xff]
      %v605 = vld [vmem:[#allocation6 + $0xaa0] sm:$0xff]
      %v606 = vld [vmem:[#allocation6 + $0xaa8] sm:$0xff]
      %v607 = vld [vmem:[#allocation6 + $0xab0] sm:$0xff]
      %v608 = vld [vmem:[#allocation6 + $0xab8] sm:$0xff]
      %v609 = vld [vmem:[#allocation6 + $0xac0] sm:$0xff]
      %v610 = vld [vmem:[#allocation6 + $0xac8] sm:$0xff]
      %v611 = vld [vmem:[#allocation6 + $0xad0] sm:$0xff]
      %v612 = vld [vmem:[#allocation6 + $0xad8] sm:$0xff]
      %v613 = vld [vmem:[#allocation6 + $0xae0] sm:$0xff]
      %v614 = vld [vmem:[#allocation6 + $0xae8] sm:$0xff]
      %v615 = vld [vmem:[#allocation6 + $0xaf0] sm:$0xff]
      %v616 = vld [vmem:[#allocation6 + $0xaf8] sm:$0xff]
      %v617 = vld [vmem:[#allocation6 + $0xb00] sm:$0xff]
      %v618 = vld [vmem:[#allocation6 + $0xb08] sm:$0xff]
      %v619 = vld [vmem:[#allocation6 + $0xb10] sm:$0xff]
      %v620 = vld [vmem:[#allocation6 + $0xb18] sm:$0xff]
      %v621 = vld [vmem:[#allocation6 + $0xb20] sm:$0xff]
      %v622 = vld [vmem:[#allocation6 + $0xb28] sm:$0xff]
      %v623 = vld [vmem:[#allocation6 + $0xb30] sm:$0xff]
      %v624 = vld [vmem:[#allocation6 + $0xb38] sm:$0xff]
      %v625 = vld [vmem:[#allocation6 + $0xb40] sm:$0xff]
      %v626 = vld [vmem:[#allocation6 + $0xb48] sm:$0xff]
      %v627 = vld [vmem:[#allocation6 + $0xb50] sm:$0xff]
      %v628 = vld [vmem:[#allocation6 + $0xb58] sm:$0xff]
      %v629 = vld [vmem:[#allocation6 + $0xb60] sm:$0xff]
      %v630 = vld [vmem:[#allocation6 + $0xb68] sm:$0xff]
      %v631 = vld [vmem:[#allocation6 + $0xb70] sm:$0xff]
      %v632 = vld [vmem:[#allocation6 + $0xb78] sm:$0xff]
      %v633 = vld [vmem:[#allocation6 + $0xb80] sm:$0xff]
      %v634 = vld [vmem:[#allocation6 + $0xb88] sm:$0xff]
      %v635 = vld [vmem:[#allocation6 + $0xb90] sm:$0xff]
      %v636 = vld [vmem:[#allocation6 + $0xb98] sm:$0xff]
      %v637 = vld [vmem:[#allocation6 + $0xba0] sm:$0xff]
      %v638 = vld [vmem:[#allocation6 + $0xba8] sm:$0xff]
      %v639 = vld [vmem:[#allocation6 + $0xbb0] sm:$0xff]
      %v640 = vld [vmem:[#allocation6 + $0xbb8] sm:$0xff]
      %v641 = vld [vmem:[#allocation6 + $0xbc0] sm:$0xff]
      %v642 = vld [vmem:[#allocation6 + $0xbc8] sm:$0xff]
      %v643 = vld [vmem:[#allocation6 + $0xbd0] sm:$0xff]
      %v644 = vld [vmem:[#allocation6 + $0xbd8] sm:$0xff]
      %v645 = vld [vmem:[#allocation6 + $0xbe0] sm:$0xff]
      %v646 = vld [vmem:[#allocation6 + $0xbe8] sm:$0xff]
      %v647 = vld [vmem:[#allocation6 + $0xbf0] sm:$0xff]
      %v648 = vld [vmem:[#allocation6 + $0xbf8] sm:$0xff]
      %v649 = vld [vmem:[#allocation8] sm:$0xf]
      %v651 = vlaneseq
      %v652 = vshrl.u32 %v651, 7
      %v653 = vsub.s32 0, %v652
      %v654 = vrot.slane %v649, %v653
      %v655 = vlaneseq
      %v656 = vshrl.u32 %v655, 7
      %v657 = vsub.s32 1, %v656
      %v658 = vrot.slane %v649, %v657
      %v659 = vlaneseq
      %v660 = vshrl.u32 %v659, 7
      %v661 = vsub.s32 2, %v660
      %v662 = vrot.slane %v649, %v661
      %v663 = vlaneseq
      %v664 = vshrl.u32 %v663, 7
      %v665 = vsub.s32 3, %v664
      %v666 = vrot.slane %v649, %v665
      %v673 = vcombine.high %v263, %v263
      %v675 = vunpack.c.l.s4 1983009808
      %v676 = vunpack.c.0.s8 %v675
      %v677 = vlaneseq
      %v678 = vshrl.u32 %v677, 7
      %v679 = vsub.s32 %v676, %v678
      %v680 = vrot.slane %v263, %v679
      %v682 = vunpack.c.l.s4 1983009808
      %v683 = vunpack.c.0.s8 %v682
      %v684 = vlaneseq
      %v685 = vshrl.u32 %v684, 7
      %v686 = vsub.s32 %v683, %v685
      %v687 = vrot.slane %v673, %v686
      %v688 = vcombine.high %v680, %v680
      %v689 = vcombine.high %v687, %v687
      %v691 = vunpack.c.l.s4 1983009808
      %v692 = vunpack.c.0.s8 %v691
      %v693 = vlaneseq
      %v694 = vshrl.u32 %v693, 7
      %v695 = vsub.s32 %v692, %v694
      %v696 = vrot.slane %v264, %v695
      %v697 = vcombine.high %v696, %v696
      %704 = vmatprep.subr.mxu0 %v326
      %705 = vmatpush1.msra.mxu0 %v325
      %706 = vmatprep.subr.mxu0 %v322
      %707 = vmatpush1.msra.mxu0 %v321
      %708 = vmatprep.subr.mxu0 %v318
      %709 = vmatpush1.msra.mxu0 %v317
      %710 = vmatprep.subr.mxu0 %v314
      %711 = vmatpush1.msra.mxu0 %v313
      %712 = vmatprep.subr.mxu0 %v310
      %713 = vmatpush1.msra.mxu0 %v309
      %714 = vmatprep.subr.mxu0 %v306
      %715 = vmatpush1.msra.mxu0 %v305
      %716 = vmatprep.subr.mxu0 %v302
      %717 = vmatpush1.msra.mxu0 %v301
      %718 = vmatprep.subr.mxu0 %v298
      %719 = vmatpush1.msra.mxu0 %v297
      %720 = vmatprep.subr.mxu0 %v294
      %721 = vmatpush1.msra.mxu0 %v293
      %722 = vmatprep.subr.mxu0 %v290
      %723 = vmatpush1.msra.mxu0 %v289
      %724 = vmatprep.subr.mxu0 %v286
      %725 = vmatpush1.msra.mxu0 %v285
      %726 = vmatprep.subr.mxu0 %v282
      %727 = vmatpush1.msra.mxu0 %v281
      %728 = vmatprep.subr.mxu0 %v278
      %729 = vmatpush1.msra.mxu0 %v277
      %730 = vmatprep.subr.mxu0 %v274
      %731 = vmatpush1.msra.mxu0 %v273
      %732 = vmatprep.subr.mxu0 %v270
      %733 = vmatpush1.msra.mxu0 %v269
      %734 = vmatprep.subr.mxu0 %v266
      %735 = vmatpush1.msra.mxu0 %v265
      %736 = vmatprep.subr.mxu0 %v390
      %737 = vmatpush2.msra.mxu0 %v389
      %738 = vmatprep.subr.mxu0 %v386
      %739 = vmatpush2.msra.mxu0 %v385
      %740 = vmatprep.subr.mxu0 %v382
      %741 = vmatpush2.msra.mxu0 %v381
      %742 = vmatprep.subr.mxu0 %v378
      %743 = vmatpush2.msra.mxu0 %v377
      %744 = vmatprep.subr.mxu0 %v374
      %745 = vmatpush2.msra.mxu0 %v373
      %746 = vmatprep.subr.mxu0 %v370
      %747 = vmatpush2.msra.mxu0 %v369
      %748 = vmatprep.subr.mxu0 %v366
      %749 = vmatpush2.msra.mxu0 %v365
      %750 = vmatprep.subr.mxu0 %v362
      %751 = vmatpush2.msra.mxu0 %v361
      %752 = vmatprep.subr.mxu0 %v358
      %753 = vmatpush2.msra.mxu0 %v357
      %754 = vmatprep.subr.mxu0 %v354
      %755 = vmatpush2.msra.mxu0 %v353
      %756 = vmatprep.subr.mxu0 %v350
      %757 = vmatpush2.msra.mxu0 %v349
      %758 = vmatprep.subr.mxu0 %v346
      %759 = vmatpush2.msra.mxu0 %v345
      %760 = vmatprep.subr.mxu0 %v342
      %761 = vmatpush2.msra.mxu0 %v341
      %762 = vmatprep.subr.mxu0 %v338
      %763 = vmatpush2.msra.mxu0 %v337
      %764 = vmatprep.subr.mxu0 %v334
      %765 = vmatpush2.msra.mxu0 %v333
      %766 = vmatprep.subr.mxu0 %v330
      %767 = vmatpush2.msra.mxu0 %v329
      %768 = vmatprep.mubr.f32.mxu0 %v688
      %769 = vmatmul.mubr.f32.gmra.mxu0 %v680
      %v770 = vpop.f32.mrf.mxu0
      %v771 = vadd.f32 %v654, %v770
      %v772 = vpop.f32.mrf.mxu0
      %v773 = vadd.f32 %v658, %v772
      %774 = vdwg.mxu0
      %775 = vmatprep.subr.mxu0 %v454
      %776 = vmatpush1.msra.mxu0 %v453
      %777 = vmatprep.subr.mxu0 %v450
      %778 = vmatpush1.msra.mxu0 %v449
      %779 = vmatprep.subr.mxu0 %v446
      %780 = vmatpush1.msra.mxu0 %v445
      %781 = vmatprep.subr.mxu0 %v442
      %782 = vmatpush1.msra.mxu0 %v441
      %783 = vmatprep.subr.mxu0 %v438
      %784 = vmatpush1.msra.mxu0 %v437
      %785 = vmatprep.subr.mxu0 %v434
      %786 = vmatpush1.msra.mxu0 %v433
      %787 = vmatprep.subr.mxu0 %v430
      %788 = vmatpush1.msra.mxu0 %v429
      %789 = vmatprep.subr.mxu0 %v426
      %790 = vmatpush1.msra.mxu0 %v425
      %791 = vmatprep.subr.mxu0 %v422
      %792 = vmatpush1.msra.mxu0 %v421
      %793 = vmatprep.subr.mxu0 %v418
      %794 = vmatpush1.msra.mxu0 %v417
      %795 = vmatprep.subr.mxu0 %v414
      %796 = vmatpush1.msra.mxu0 %v413
      %797 = vmatprep.subr.mxu0 %v410
      %798 = vmatpush1.msra.mxu0 %v409
      %799 = vmatprep.subr.mxu0 %v406
      %800 = vmatpush1.msra.mxu0 %v405
      %801 = vmatprep.subr.mxu0 %v402
      %802 = vmatpush1.msra.mxu0 %v401
      %803 = vmatprep.subr.mxu0 %v398
      %804 = vmatpush1.msra.mxu0 %v397
      %805 = vmatprep.subr.mxu0 %v394
      %806 = vmatpush1.msra.mxu0 %v393
      %807 = vmatprep.subr.mxu0 %v518
      %808 = vmatpush2.msra.mxu0 %v517
      %809 = vmatprep.subr.mxu0 %v514
      %810 = vmatpush2.msra.mxu0 %v513
      %811 = vmatprep.subr.mxu0 %v510
      %812 = vmatpush2.msra.mxu0 %v509
      %813 = vmatprep.subr.mxu0 %v506
      %814 = vmatpush2.msra.mxu0 %v505
      %815 = vmatprep.subr.mxu0 %v502
      %816 = vmatpush2.msra.mxu0 %v501
      %817 = vmatprep.subr.mxu0 %v498
      %818 = vmatpush2.msra.mxu0 %v497
      %819 = vmatprep.subr.mxu0 %v494
      %820 = vmatpush2.msra.mxu0 %v493
      %821 = vmatprep.subr.mxu0 %v490
      %822 = vmatpush2.msra.mxu0 %v489
      %823 = vmatprep.subr.mxu0 %v486
      %824 = vmatpush2.msra.mxu0 %v485
      %825 = vmatprep.subr.mxu0 %v482
      %826 = vmatpush2.msra.mxu0 %v481
      %827 = vmatprep.subr.mxu0 %v478
      %828 = vmatpush2.msra.mxu0 %v477
      %829 = vmatprep.subr.mxu0 %v474
      %830 = vmatpush2.msra.mxu0 %v473
      %831 = vmatprep.subr.mxu0 %v470
      %832 = vmatpush2.msra.mxu0 %v469
      %833 = vmatprep.subr.mxu0 %v466
      %834 = vmatpush2.msra.mxu0 %v465
      %835 = vmatprep.subr.mxu0 %v462
      %836 = vmatpush2.msra.mxu0 %v461
      %837 = vmatprep.subr.mxu0 %v458
      %838 = vmatpush2.msra.mxu0 %v457
      %839 = vmatprep.mubr.f32.mxu0 %v689
      %840 = vmatmul.mubr.f32.gmra.mxu0 %v687
      %v841 = vpop.f32.mrf.mxu0
      %v842 = vadd.f32 %v771, %v841
      %v843 = vpop.f32.mrf.mxu0
      %v844 = vadd.f32 %v773, %v843
      %845 = vdwg.mxu0
      %846 = vmatprep.subr.mxu0 %v582
      %847 = vmatpush1.msra.mxu0 %v581
      %848 = vmatprep.subr.mxu0 %v578
      %849 = vmatpush1.msra.mxu0 %v577
      %850 = vmatprep.subr.mxu0 %v574
      %851 = vmatpush1.msra.mxu0 %v573
      %852 = vmatprep.subr.mxu0 %v570
      %853 = vmatpush1.msra.mxu0 %v569
      %854 = vmatprep.subr.mxu0 %v566
      %855 = vmatpush1.msra.mxu0 %v565
      %856 = vmatprep.subr.mxu0 %v562
      %857 = vmatpush1.msra.mxu0 %v561
      %858 = vmatprep.subr.mxu0 %v558
      %859 = vmatpush1.msra.mxu0 %v557
      %860 = vmatprep.subr.mxu0 %v554
      %861 = vmatpush1.msra.mxu0 %v553
      %862 = vmatprep.subr.mxu0 %v550
      %863 = vmatpush1.msra.mxu0 %v549
      %864 = vmatprep.subr.mxu0 %v546
      %865 = vmatpush1.msra.mxu0 %v545
      %866 = vmatprep.subr.mxu0 %v542
      %867 = vmatpush1.msra.mxu0 %v541
      %868 = vmatprep.subr.mxu0 %v538
      %869 = vmatpush1.msra.mxu0 %v537
      %870 = vmatprep.subr.mxu0 %v534
      %871 = vmatpush1.msra.mxu0 %v533
      %872 = vmatprep.subr.mxu0 %v530
      %873 = vmatpush1.msra.mxu0 %v529
      %874 = vmatprep.subr.mxu0 %v526
      %875 = vmatpush1.msra.mxu0 %v525
      %876 = vmatprep.subr.mxu0 %v522
      %877 = vmatpush1.msra.mxu0 %v521
      %878 = vmatprep.subr.mxu0 %v646
      %879 = vmatpush2.msra.mxu0 %v645
      %880 = vmatprep.subr.mxu0 %v642
      %881 = vmatpush2.msra.mxu0 %v641
      %882 = vmatprep.subr.mxu0 %v638
      %883 = vmatpush2.msra.mxu0 %v637
      %884 = vmatprep.subr.mxu0 %v634
      %885 = vmatpush2.msra.mxu0 %v633
      %886 = vmatprep.subr.mxu0 %v630
      %887 = vmatpush2.msra.mxu0 %v629
      %888 = vmatprep.subr.mxu0 %v626
      %889 = vmatpush2.msra.mxu0 %v625
      %890 = vmatprep.subr.mxu0 %v622
      %891 = vmatpush2.msra.mxu0 %v621
      %892 = vmatprep.subr.mxu0 %v618
      %893 = vmatpush2.msra.mxu0 %v617
      %894 = vmatprep.subr.mxu0 %v614
      %895 = vmatpush2.msra.mxu0 %v613
      %896 = vmatprep.subr.mxu0 %v610
      %897 = vmatpush2.msra.mxu0 %v609
      %898 = vmatprep.subr.mxu0 %v606
      %899 = vmatpush2.msra.mxu0 %v605
      %900 = vmatprep.subr.mxu0 %v602
      %901 = vmatpush2.msra.mxu0 %v601
      %902 = vmatprep.subr.mxu0 %v598
      %903 = vmatpush2.msra.mxu0 %v597
      %904 = vmatprep.subr.mxu0 %v594
      %905 = vmatpush2.msra.mxu0 %v593
      %906 = vmatprep.subr.mxu0 %v590
      %907 = vmatpush2.msra.mxu0 %v589
      %908 = vmatprep.subr.mxu0 %v586
      %909 = vmatpush2.msra.mxu0 %v585
      %910 = vmatprep.mubr.f32.mxu0 %v697
      %911 = vmatmul.mubr.f32.gmra.mxu0 %v696
      %v912 = vpop.f32.mrf.mxu0
      %v913 = vadd.f32 %v842, %v912
      %v914 = vpop.f32.mrf.mxu0
      %v915 = vadd.f32 %v844, %v914
      %916 = vdwg.mxu0
      %917 = vmatprep.subr.mxu0 %v328
      %918 = vmatpush1.msra.mxu0 %v327
      %919 = vmatprep.subr.mxu0 %v324
      %920 = vmatpush1.msra.mxu0 %v323
      %921 = vmatprep.subr.mxu0 %v320
      %922 = vmatpush1.msra.mxu0 %v319
      %923 = vmatprep.subr.mxu0 %v316
      %924 = vmatpush1.msra.mxu0 %v315
      %925 = vmatprep.subr.mxu0 %v312
      %926 = vmatpush1.msra.mxu0 %v311
      %927 = vmatprep.subr.mxu0 %v308
      %928 = vmatpush1.msra.mxu0 %v307
      %929 = vmatprep.subr.mxu0 %v304
      %930 = vmatpush1.msra.mxu0 %v303
      %931 = vmatprep.subr.mxu0 %v300
      %932 = vmatpush1.msra.mxu0 %v299
      %933 = vmatprep.subr.mxu0 %v296
      %934 = vmatpush1.msra.mxu0 %v295
      %935 = vmatprep.subr.mxu0 %v292
      %936 = vmatpush1.msra.mxu0 %v291
      %937 = vmatprep.subr.mxu0 %v288
      %938 = vmatpush1.msra.mxu0 %v287
      %939 = vmatprep.subr.mxu0 %v284
      %940 = vmatpush1.msra.mxu0 %v283
      %941 = vmatprep.subr.mxu0 %v280
      %942 = vmatpush1.msra.mxu0 %v279
      %943 = vmatprep.subr.mxu0 %v276
      %944 = vmatpush1.msra.mxu0 %v275
      %945 = vmatprep.subr.mxu0 %v272
      %946 = vmatpush1.msra.mxu0 %v271
      %947 = vmatprep.subr.mxu0 %v268
      %948 = vmatpush1.msra.mxu0 %v267
      %949 = vmatprep.subr.mxu0 %v392
      %950 = vmatpush2.msra.mxu0 %v391
      %951 = vmatprep.subr.mxu0 %v388
      %952 = vmatpush2.msra.mxu0 %v387
      %953 = vmatprep.subr.mxu0 %v384
      %954 = vmatpush2.msra.mxu0 %v383
      %955 = vmatprep.subr.mxu0 %v380
      %956 = vmatpush2.msra.mxu0 %v379
      %957 = vmatprep.subr.mxu0 %v376
      %958 = vmatpush2.msra.mxu0 %v375
      %959 = vmatprep.subr.mxu0 %v372
      %960 = vmatpush2.msra.mxu0 %v371
      %961 = vmatprep.subr.mxu0 %v368
      %962 = vmatpush2.msra.mxu0 %v367
      %963 = vmatprep.subr.mxu0 %v364
      %964 = vmatpush2.msra.mxu0 %v363
      %965 = vmatprep.subr.mxu0 %v360
      %966 = vmatpush2.msra.mxu0 %v359
      %967 = vmatprep.subr.mxu0 %v356
      %968 = vmatpush2.msra.mxu0 %v355
      %969 = vmatprep.subr.mxu0 %v352
      %970 = vmatpush2.msra.mxu0 %v351
      %971 = vmatprep.subr.mxu0 %v348
      %972 = vmatpush2.msra.mxu0 %v347
      %973 = vmatprep.subr.mxu0 %v344
      %974 = vmatpush2.msra.mxu0 %v343
      %975 = vmatprep.subr.mxu0 %v340
      %976 = vmatpush2.msra.mxu0 %v339
      %977 = vmatprep.subr.mxu0 %v336
      %978 = vmatpush2.msra.mxu0 %v335
      %979 = vmatprep.subr.mxu0 %v332
      %980 = vmatpush2.msra.mxu0 %v331
      %981 = vmatprep.mubr.f32.mxu0 %v688
      %982 = vmatmul.mubr.f32.gmra.mxu0 %v680
      %v983 = vpop.f32.mrf.mxu0
      %v984 = vadd.f32 %v662, %v983
      %v985 = vpop.f32.mrf.mxu0
      %v986 = vadd.f32 %v666, %v985
      %987 = vdwg.mxu0
      %988 = vmatprep.subr.mxu0 %v456
      %989 = vmatpush1.msra.mxu0 %v455
      %990 = vmatprep.subr.mxu0 %v452
      %991 = vmatpush1.msra.mxu0 %v451
      %992 = vmatprep.subr.mxu0 %v448
      %993 = vmatpush1.msra.mxu0 %v447
      %994 = vmatprep.subr.mxu0 %v444
      %995 = vmatpush1.msra.mxu0 %v443
      %996 = vmatprep.subr.mxu0 %v440
      %997 = vmatpush1.msra.mxu0 %v439
      %998 = vmatprep.subr.mxu0 %v436
      %999 = vmatpush1.msra.mxu0 %v435
      %1000 = vmatprep.subr.mxu0 %v432
      %1001 = vmatpush1.msra.mxu0 %v431
      %1002 = vmatprep.subr.mxu0 %v428
      %1003 = vmatpush1.msra.mxu0 %v427
      %1004 = vmatprep.subr.mxu0 %v424
      %1005 = vmatpush1.msra.mxu0 %v423
      %1006 = vmatprep.subr.mxu0 %v420
      %1007 = vmatpush1.msra.mxu0 %v419
      %1008 = vmatprep.subr.mxu0 %v416
      %1009 = vmatpush1.msra.mxu0 %v415
      %1010 = vmatprep.subr.mxu0 %v412
      %1011 = vmatpush1.msra.mxu0 %v411
      %1012 = vmatprep.subr.mxu0 %v408
      %1013 = vmatpush1.msra.mxu0 %v407
      %1014 = vmatprep.subr.mxu0 %v404
      %1015 = vmatpush1.msra.mxu0 %v403
      %1016 = vmatprep.subr.mxu0 %v400
      %1017 = vmatpush1.msra.mxu0 %v399
      %1018 = vmatprep.subr.mxu0 %v396
      %1019 = vmatpush1.msra.mxu0 %v395
      %1020 = vmatprep.subr.mxu0 %v520
      %1021 = vmatpush2.msra.mxu0 %v519
      %1022 = vmatprep.subr.mxu0 %v516
      %1023 = vmatpush2.msra.mxu0 %v515
      %1024 = vmatprep.subr.mxu0 %v512
      %1025 = vmatpush2.msra.mxu0 %v511
      %1026 = vmatprep.subr.mxu0 %v508
      %1027 = vmatpush2.msra.mxu0 %v507
      %1028 = vmatprep.subr.mxu0 %v504
      %1029 = vmatpush2.msra.mxu0 %v503
      %1030 = vmatprep.subr.mxu0 %v500
      %1031 = vmatpush2.msra.mxu0 %v499
      %1032 = vmatprep.subr.mxu0 %v496
      %1033 = vmatpush2.msra.mxu0 %v495
      %1034 = vmatprep.subr.mxu0 %v492
      %1035 = vmatpush2.msra.mxu0 %v491
      %1036 = vmatprep.subr.mxu0 %v488
      %1037 = vmatpush2.msra.mxu0 %v487
      %1038 = vmatprep.subr.mxu0 %v484
      %1039 = vmatpush2.msra.mxu0 %v483
      %1040 = vmatprep.subr.mxu0 %v480
      %1041 = vmatpush2.msra.mxu0 %v479
      %1042 = vmatprep.subr.mxu0 %v476
      %1043 = vmatpush2.msra.mxu0 %v475
      %1044 = vmatprep.subr.mxu0 %v472
      %1045 = vmatpush2.msra.mxu0 %v471
      %1046 = vmatprep.subr.mxu0 %v468
      %1047 = vmatpush2.msra.mxu0 %v467
      %1048 = vmatprep.subr.mxu0 %v464
      %1049 = vmatpush2.msra.mxu0 %v463
      %1050 = vmatprep.subr.mxu0 %v460
      %1051 = vmatpush2.msra.mxu0 %v459
      %1052 = vmatprep.mubr.f32.mxu0 %v689
      %1053 = vmatmul.mubr.f32.gmra.mxu0 %v687
      %v1054 = vpop.f32.mrf.mxu0
      %v1055 = vadd.f32 %v984, %v1054
      %v1056 = vpop.f32.mrf.mxu0
      %v1057 = vadd.f32 %v986, %v1056
      %1058 = vdwg.mxu0
      %1059 = vmatprep.subr.mxu0 %v584
      %1060 = vmatpush1.msra.mxu0 %v583
      %1061 = vmatprep.subr.mxu0 %v580
      %1062 = vmatpush1.msra.mxu0 %v579
      %1063 = vmatprep.subr.mxu0 %v576
      %1064 = vmatpush1.msra.mxu0 %v575
      %1065 = vmatprep.subr.mxu0 %v572
      %1066 = vmatpush1.msra.mxu0 %v571
      %1067 = vmatprep.subr.mxu0 %v568
      %1068 = vmatpush1.msra.mxu0 %v567
      %1069 = vmatprep.subr.mxu0 %v564
      %1070 = vmatpush1.msra.mxu0 %v563
      %1071 = vmatprep.subr.mxu0 %v560
      %1072 = vmatpush1.msra.mxu0 %v559
      %1073 = vmatprep.subr.mxu0 %v556
      %1074 = vmatpush1.msra.mxu0 %v555
      %1075 = vmatprep.subr.mxu0 %v552
      %1076 = vmatpush1.msra.mxu0 %v551
      %1077 = vmatprep.subr.mxu0 %v548
      %1078 = vmatpush1.msra.mxu0 %v547
      %1079 = vmatprep.subr.mxu0 %v544
      %1080 = vmatpush1.msra.mxu0 %v543
      %1081 = vmatprep.subr.mxu0 %v540
      %1082 = vmatpush1.msra.mxu0 %v539
      %1083 = vmatprep.subr.mxu0 %v536
      %1084 = vmatpush1.msra.mxu0 %v535
      %1085 = vmatprep.subr.mxu0 %v532
      %1086 = vmatpush1.msra.mxu0 %v531
      %1087 = vmatprep.subr.mxu0 %v528
      %1088 = vmatpush1.msra.mxu0 %v527
      %1089 = vmatprep.subr.mxu0 %v524
      %1090 = vmatpush1.msra.mxu0 %v523
      %1091 = vmatprep.subr.mxu0 %v648
      %1092 = vmatpush2.msra.mxu0 %v647
      %1093 = vmatprep.subr.mxu0 %v644
      %1094 = vmatpush2.msra.mxu0 %v643
      %1095 = vmatprep.subr.mxu0 %v640
      %1096 = vmatpush2.msra.mxu0 %v639
      %1097 = vmatprep.subr.mxu0 %v636
      %1098 = vmatpush2.msra.mxu0 %v635
      %1099 = vmatprep.subr.mxu0 %v632
      %1100 = vmatpush2.msra.mxu0 %v631
      %1101 = vmatprep.subr.mxu0 %v628
      %1102 = vmatpush2.msra.mxu0 %v627
      %1103 = vmatprep.subr.mxu0 %v624
      %1104 = vmatpush2.msra.mxu0 %v623
      %1105 = vmatprep.subr.mxu0 %v620
      %1106 = vmatpush2.msra.mxu0 %v619
      %1107 = vmatprep.subr.mxu0 %v616
      %1108 = vmatpush2.msra.mxu0 %v615
      %1109 = vmatprep.subr.mxu0 %v612
      %1110 = vmatpush2.msra.mxu0 %v611
      %1111 = vmatprep.subr.mxu0 %v608
      %1112 = vmatpush2.msra.mxu0 %v607
      %1113 = vmatprep.subr.mxu0 %v604
      %1114 = vmatpush2.msra.mxu0 %v603
      %1115 = vmatprep.subr.mxu0 %v600
      %1116 = vmatpush2.msra.mxu0 %v599
      %1117 = vmatprep.subr.mxu0 %v596
      %1118 = vmatpush2.msra.mxu0 %v595
      %1119 = vmatprep.subr.mxu0 %v592
      %1120 = vmatpush2.msra.mxu0 %v591
      %1121 = vmatprep.subr.mxu0 %v588
      %1122 = vmatpush2.msra.mxu0 %v587
      %1123 = vmatprep.mubr.f32.mxu0 %v697
      %1124 = vmatmul.mubr.f32.gmra.mxu0 %v696
      %v1125 = vpop.f32.mrf.mxu0
      %v1126 = vadd.f32 %v1055, %v1125
      %v1127 = vpop.f32.mrf.mxu0
      %v1128 = vadd.f32 %v1057, %v1127
      %1129 = vdwg.mxu0
      %v1130 = vmul.f32 %v913, %v913
      %v1131 = vmul.f32 %v915, %v915
      %v1132 = vmul.f32 %v1126, %v1126
      %v1133 = vmul.f32 %v1128, %v1128
      %vm1134 = vcmask 1041408
      %v1135 = vsel %vm1134, %v1130, 0.0
      %v1136 = vsel %vm1134, %v1131, 0.0
      %v1137 = vadd.f32 %v1135, %v1136
      %v1138 = vsel %vm1134, %v1132, 0.0
      %v1139 = vadd.f32 %v1137, %v1138
      %v1140 = vsel %vm1134, %v1133, 0.0
      %v1141 = vadd.f32 %v1139, %v1140
      %1142 = vadd.xlane.f32.xlu0 %v1141
      %v1143 = vpop.xlane.xlu0 %1142
      %v1144 = vmax.f32 %v1143, 1e-24
      %v1145 = vrsqrt.pop %v1144
      %v1146 = vmul.f32 %v913, %v1145
      %v1147 = vmul.f32 %v915, %v1145
      %v1148 = vmul.f32 %v1126, %v1145
      %v1149 = vmul.f32 %v1128, %v1145
      %v1154 = vcombine.low %v1146, %v1147
      %v1155 = vcombine.low %v1148, %v1149
      %v1157 = vunpack.c.l.s4 1983009808
      %v1158 = vunpack.c.0.s8 %v1157
      %v1159 = vlaneseq
      %v1160 = vshrl.u32 %v1159, 7
      %v1161 = vsub.s32 %v1158, %v1160
      %v1162 = vrot.slane %v1154, %v1161
      %v1164 = vunpack.c.l.s4 1983009808
      %v1165 = vunpack.c.0.s8 %v1164
      %v1166 = vlaneseq
      %v1167 = vshrl.u32 %v1166, 7
      %v1168 = vsub.s32 %v1165, %v1167
      %v1169 = vrot.slane %v1155, %v1168
      %v1170 = vcombine.low %v1162, %v1169
      %1172 = vst [vmem:[#allocation9] sm:$0xff] %v1170
    $region33: #{tpu_custom_call.1} parent=1 // pred_fallthru
      _
    // Predicated region
    $region34: #{tpu_custom_call.1} parent=1 // pred_check
      _
    $region35: #{tpu_custom_call.1} parent=1 // pred_check_branch
      %1174 = sbr.rel (0) target = $region37
    $region36: #{tpu_custom_call.1} parent=1 // pred_region
      %s1176 = ssub.s32 128, 128
      %1177 = vsyncadd [#allocation5], %s1176
      %s1179 = sshll.u32 [#allocation9], 4
      %s1180 = int_to_ptr.vmem [resolvable:$true] %s1179
      %1182 = dma.vmem_to_hbm [thread:$0]  %s1180, 128, %s3, [#allocation5]
    $region37: #{tpu_custom_call.1} parent=1 // pred_fallthru
      _
    // Predicated region
    $region38: #{tpu_custom_call.1} parent=1 // pred_check
      _
    $region39: #{tpu_custom_call.1} parent=1 // pred_check_branch
      %1184 = sbr.rel (0) target = $region41
    $region40: #{tpu_custom_call.1} parent=1 // pred_region
      %1185 = dma.done [#allocation5], 128
    $region41: #{tpu_custom_call.1} parent=1 // pred_fallthru
      _
    %1186 = vsyncpa [#allocation4], 1
    %1187 = vsyncpa [#allocation7], 1
    %1188 = vsyncpa [#allocation5], 1

</llo_original>
